<compile_context>
chip_gen: v7x
topology: tpu7x:2x2x1
jax: 0.10.0
libtpu: 0.0.40
codegen_flags: <defaults>
</compile_context>

<pallas_src>
import jax
import jax.numpy as jnp
from jax.experimental import pallas as pl
from jax.experimental.pallas import tpu as pltpu


def _round_up(x: int, m: int) -> int:
    return (x + m - 1) // m * m


def highway_kernel(x_ref, w_ref, b_ref, o_ref):
    dp = x_ref.shape[-1]                 # padded feature dim (multiple of 128)
    layer = pl.program_id(1)             # inner grid axis = layer index

    # Layer 0: seed the resident output block (the carried activation) with x.
    @pl.when(layer == 0)
    def _():
        o_ref[...] = x_ref[...]

    cur = o_ref[...]                     # (TN, Dp) f32 carried activation

    # Fused projection: one wide bf16 MXU matmul, f32 accumulation.
    w = w_ref[layer]                     # (Dp, 2*Dp) bf16, VMEM-resident weights
    bias = b_ref[layer]                  # (1, 2*Dp)  f32
    y = jnp.dot(cur.astype(jnp.bfloat16), w,
                preferred_element_type=jnp.float32) + bias    # (TN, 2*Dp) f32

    h = y[:, :dp]                        # nonlinear half (lane-aligned slice)
    g = y[:, dp:]                        # gate half

    nl = jnp.maximum(h, 0.0)                                   # relu (VPU, f32)
    gate = pl.reciprocal(1.0 + jnp.exp(-g), approx=True)       # sigmoid via EUP

    # gate*cur + (1-gate)*nl  ==  nl + gate*(cur - nl)   (one fewer VPU op)
    o_ref[...] = nl + gate * (cur - nl)


def highway_forward(x, weight, bias):
    """Highway stack.

    x:      (..., D)    f32
    weight: (L, 2D, D)  f32  -- torch nn.Linear weights; rows [:D] = nonlinear
                                projection, rows [D:] = gate projection.
    bias:   (L, 2D)     f32
    """
    orig_shape = x.shape
    D = orig_shape[-1]
    L = weight.shape[0]
    Dp = _round_up(D, 128)               # lane-dense feature dim

    # Fused / transposed / zero-padded weights: (L, Dp, 2*Dp), bf16 for the MXU.
    w = jnp.zeros((L, Dp, 2 * Dp), jnp.float32)
    w = w.at[:, :D, :D].set(jnp.transpose(weight[:, :D, :], (0, 2, 1)))       # Wh
    w = w.at[:, :D, Dp:Dp + D].set(jnp.transpose(weight[:, D:, :], (0, 2, 1)))  # Wg
    w = w.astype(jnp.bfloat16)

    # Fused bias (f32). Padded lanes keep bias 0: cur=0, h=0 -> relu 0,
    # gate=sigmoid(0)=0.5 -> out = 0.5*0 + 0.5*0 = 0, so padding never leaks.
    b = jnp.zeros((L, 1, 2 * Dp), jnp.float32)
    b = b.at[:, 0, :D].set(bias[:, :D])
    b = b.at[:, 0, Dp:Dp + D].set(bias[:, D:])

    x2d = x.reshape(-1, D).astype(jnp.float32)
    N = x2d.shape[0]

    # Pick the row tile: biggest power-of-two (<=512) whose VMEM footprint
    # (resident weights + double-buffered activation blocks + f32 intermediates)
    # stays under a conservative budget that fits all generations (incl. v7x).
    vmem_budget = 24 * 1024 * 1024
    w_bytes = 2 * (w.size * 2 + b.size * 4)      # allow 2 buffers for safety

    def _row_tile_bytes(tn):
        act = 2 * 2 * tn * Dp * 4                # x block + out block, 2-deep
        tmp = 4 * tn * 2 * Dp * 4                # (TN, 2Dp) f32 intermediates
        return act + tmp

    TN = 512
    while TN > 8 and w_bytes + _row_tile_bytes(TN) > vmem_budget:
        TN //= 2
    TN = min(TN, _round_up(N, 8))
    Np = _round_up(N, TN)

    x_pad = jnp.zeros((Np, Dp), jnp.float32).at[:N, :D].set(x2d)

    grid = (Np // TN, L)                 # rows outer (parallel), layers inner

    out = pl.pallas_call(
        highway_kernel,
        out_shape=jax.ShapeDtypeStruct((Np, Dp), jnp.float32),
        grid_spec=pltpu.PrefetchScalarGridSpec(
            num_scalar_prefetch=0,
            grid=grid,
            in_specs=[
                # activations: one fetch per row tile (index constant over layers)
                pl.BlockSpec((TN, Dp), lambda r, l: (r, 0)),
                # all layers' weights / biases: fetched once, VMEM-resident
                pl.BlockSpec((L, Dp, 2 * Dp), lambda r, l: (0, 0, 0)),
                pl.BlockSpec((L, 1, 2 * Dp), lambda r, l: (0, 0, 0)),
            ],
            # resident across the layer axis; written back once per row tile
            out_specs=pl.BlockSpec((TN, Dp), lambda r, l: (r, 0)),
        ),
        compiler_params=pltpu.CompilerParams(
            dimension_semantics=("parallel", "arbitrary"),
            vmem_limit_bytes=32 * 1024 * 1024,
        ),
        cost_estimate=pl.CostEstimate(
            flops=4 * Np * Dp * Dp * L,
            transcendentals=Np * Dp * L,
            bytes_accessed=2 * Np * Dp * 4 + w.size * 2 + b.size * 4,
        ),
        input_output_aliases={0: 0},     # donate x_pad's HBM buffer to the output
    )(x_pad, w, b)

    return out[:N, :D].reshape(orig_shape)


def highway_reference(x, weight, bias):
    """Pure-JAX f32 reference mirroring the PyTorch forward."""
    D = x.shape[-1]
    cur = x
    for l in range(weight.shape[0]):
        proj = cur @ weight[l].T + bias[l]
        h, g = proj[..., :D], proj[..., D:]
        nl = jnp.maximum(h, 0.0)
        gate = jax.nn.sigmoid(g)
        cur = gate * cur + (1.0 - gate) * nl
    return cur


if __name__ == "__main__":
    batch, seq, input_dim = 2, 8, 32
    num_layers = 2

    key = jax.random.PRNGKey(0)
    kx, kw = jax.random.split(key)

    x = jax.random.normal(kx, (batch, seq, input_dim), dtype=jnp.float32)

    # torch.nn.Linear(input_dim, 2*input_dim): weight (2D, D), y = x @ W.T + b.
    # bias[D:] filled with 1 to match layer.bias[input_dim:].data.fill_(1).
    wkeys = jax.random.split(kw, num_layers)
    weight = jnp.stack(
        [0.1 * jax.random.normal(k, (2 * input_dim, input_dim), dtype=jnp.float32)
         for k in wkeys]
    )                                                        # (L, 2D, D)
    bias = jnp.concatenate(
        [jnp.zeros((num_layers, input_dim), jnp.float32),
         jnp.ones((num_layers, input_dim), jnp.float32)], axis=-1)   # (L, 2D)

    out = jax.block_until_ready(highway_forward(x, weight, bias))
    ref = highway_reference(x, weight, bias)

    assert out.shape == x.shape
    # bf16 MXU operands (f32 accumulation) -> loosened tolerance vs the f32 ref.
    max_err = float(jnp.max(jnp.abs(out - ref)))
    assert max_err < 2e-2, f"mismatch vs reference: max|diff|={max_err}"
    print("KERNEL_OK")
</pallas_src>

<mosaic_0001>
module attributes {stable_mosaic.version = 11 : i64} {
  func.func @highway_kernel(%arg0: i32, %arg1: i32, %arg2: memref<16x128xf32, #tpu.memory_space<vmem>>, %arg3: memref<2x128x256xbf16, #tpu.memory_space<vmem>>, %arg4: memref<2x1x256xf32, #tpu.memory_space<vmem>>, %arg5: memref<16x128xf32, #tpu.memory_space<vmem>>) attributes {dimension_semantics = [#tpu.dimension_semantics<parallel>, #tpu.dimension_semantics<arbitrary>], iteration_bounds = array<i64: 1, 2>, scalar_prefetch = 0 : i64, scratch_operands = 0 : i64, tpu.core_type = #tpu.core_type<tc>, window_params = [{transform_indices = @transform_0, window_bounds = array<i64: 16, 128>}, {pipeline_mode = #tpu.pipeline_mode<synchronous>, transform_indices = @transform_1, window_bounds = array<i64: 2, 128, 256>}, {pipeline_mode = #tpu.pipeline_mode<synchronous>, transform_indices = @transform_2, window_bounds = array<i64: 2, 1, 256>}, {transform_indices = @transform_3, window_bounds = array<i64: 16, 128>}]} {
    %c0_i32 = arith.constant 0 : i32
    %0 = arith.cmpi eq, %arg1, %c0_i32 : i32
    %1 = arith.extui %0 : i1 to i32
    %c0_i32_0 = arith.constant 0 : i32
    %2 = arith.cmpi ne, %1, %c0_i32_0 : i32
    scf.if %2 {
      %c0_11 = arith.constant 0 : index
      %c0_12 = arith.constant 0 : index
      %28 = vector.load %arg2[%c0_11, %c0_12] : memref<16x128xf32, #tpu.memory_space<vmem>>, vector<16x128xf32>
      %c0_13 = arith.constant 0 : index
      %c0_14 = arith.constant 0 : index
      %29 = vector.load %arg5[%c0_13, %c0_14] : memref<16x128xf32, #tpu.memory_space<vmem>>, vector<16x128xf32>
      tpu.vector_store %arg5[%c0_13, %c0_14], %28 {strides = array<i32>} : memref<16x128xf32, #tpu.memory_space<vmem>>, vector<16x128xf32>,
    } else {
    }
    %c0 = arith.constant 0 : index
    %c0_1 = arith.constant 0 : index
    %3 = vector.load %arg5[%c0, %c0_1] : memref<16x128xf32, #tpu.memory_space<vmem>>, vector<16x128xf32>
    %4 = arith.index_cast %arg1 : i32 to index
    %c0_2 = arith.constant 0 : index
    %c0_3 = arith.constant 0 : index
    %5 = vector.load %arg3[%4, %c0_2, %c0_3] : memref<2x128x256xbf16, #tpu.memory_space<vmem>>, vector<1x128x256xbf16>
    %6 = vector.shape_cast %5 : vector<1x128x256xbf16> to vector<128x256xbf16>
    %7 = arith.index_cast %arg1 : i32 to index
    %c0_4 = arith.constant 0 : index
    %c0_5 = arith.constant 0 : index
    %8 = vector.load %arg4[%7, %c0_4, %c0_5] : memref<2x1x256xf32, #tpu.memory_space<vmem>>, vector<1x1x256xf32>
    %9 = vector.shape_cast %8 : vector<1x1x256xf32> to vector<1x256xf32>
    %10 = arith.truncf %3 : vector<16x128xf32> to vector<16x128xbf16>
    %cst = arith.constant dense<0.000000e+00> : vector<16x256xf32>
    %11 = tpu.matmul %10, %6, %cst {dimension_numbers = #tpu.dot_dimension_numbers<[1], [0], [0], [1], [0, 0, 1, 1], [], []>} : vector<16x128xbf16>, vector<128x256xbf16>, vector<16x256xf32> -> vector<16x256xf32>
    %12 = vector.broadcast %9 : vector<1x256xf32> to vector<16x256xf32>
    %13 = arith.addf %11, %12 : vector<16x256xf32>
    %14 = vector.extract_strided_slice %13 {offsets = [0, 0], sizes = [16, 128], strides = [1, 1]} : vector<16x256xf32> to vector<16x128xf32>
    %15 = vector.extract_strided_slice %13 {offsets = [0, 128], sizes = [16, 128], strides = [1, 1]} : vector<16x256xf32> to vector<16x128xf32>
    %cst_6 = arith.constant 0.000000e+00 : f32
    %16 = vector.broadcast %cst_6 : f32 to vector<16x128xf32>
    %17 = arith.maximumf %14, %16 : vector<16x128xf32>
    %cst_7 = arith.constant 0.000000e+00 : f32
    %18 = vector.broadcast %cst_7 : f32 to vector<16x128xf32>
    %19 = arith.subf %18, %15 : vector<16x128xf32>
    %20 = math.exp %19 : vector<16x128xf32>
    %cst_8 = arith.constant 1.000000e+00 : f32
    %21 = vector.broadcast %cst_8 : f32 to vector<16x128xf32>
    %22 = arith.addf %21, %20 : vector<16x128xf32>
    %23 = tpu.reciprocal %22 {approx = true} : vector<16x128xf32> -> vector<16x128xf32>
    %24 = arith.subf %3, %17 : vector<16x128xf32>
    %25 = arith.mulf %23, %24 : vector<16x128xf32>
    %26 = arith.addf %17, %25 : vector<16x128xf32>
    %c0_9 = arith.constant 0 : index
    %c0_10 = arith.constant 0 : index
    %27 = vector.load %arg5[%c0_9, %c0_10] : memref<16x128xf32, #tpu.memory_space<vmem>>, vector<16x128xf32>
    tpu.vector_store %arg5[%c0_9, %c0_10], %26 {strides = array<i32>} : memref<16x128xf32, #tpu.memory_space<vmem>>, vector<16x128xf32>,
    return
  }
  func.func @transform_0(%arg0: i32, %arg1: i32) -> (i32, i32) {
    %c0_i32 = arith.constant 0 : i32
    %c0_i32_0 = arith.constant 0 : i32
    return %arg0, %c0_i32 : i32, i32
  }
  func.func @transform_1(%arg0: i32, %arg1: i32) -> (i32, i32, i32) {
    %c0_i32 = arith.constant 0 : i32
    %c0_i32_0 = arith.constant 0 : i32
    %c0_i32_1 = arith.constant 0 : i32
    %c0_i32_2 = arith.constant 0 : i32
    return %c0_i32, %c0_i32_0, %c0_i32_1 : i32, i32, i32
  }
  func.func @transform_2(%arg0: i32, %arg1: i32) -> (i32, i32, i32) {
    %c0_i32 = arith.constant 0 : i32
    %c0_i32_0 = arith.constant 0 : i32
    %c0_i32_1 = arith.constant 0 : i32
    %c0_i32_2 = arith.constant 0 : i32
    return %c0_i32, %c0_i32_0, %c0_i32_1 : i32, i32, i32
  }
  func.func @transform_3(%arg0: i32, %arg1: i32) -> (i32, i32) {
    %c0_i32 = arith.constant 0 : i32
    %c0_i32_0 = arith.constant 0 : i32
    return %arg0, %c0_i32 : i32, i32
  }
}

</mosaic_0001>

<llo_original>
// kernel: tpu_custom_call.1
$region0: #{tpu_custom_call.1}
  #allocation0 [shape = 'u32[]', space=smem, size = 0x4, offset = 0x4, fixed_abs, tag = 'smem constant byte address 0x4 - core index']
  #allocation1 [shape = 'u32[144,128]{1,0:T(1,128)}', space=vmem, size = 0x12000, scoped, tag = 'internal scratch']
  %s0 = inlined_call_operand.hbm [shape: f32[16,128], index: 0, kind: input, shape index: {}, may-alias: {0,3}]
  %s1 = inlined_call_operand.hbm [shape: bf16[2,128,256], index: 1, kind: input, shape index: {}]
  %s2 = inlined_call_operand.vmem [shape: f32[2,1,256], index: 2, kind: input, shape index: {}]
  %s3 = inlined_call_operand.hbm [shape: f32[16,128], index: 3, kind: output, shape index: {}, may-alias: {0,3}]
  %s4 = sld [smem:[#allocation0]]
  $region57: #{tpu_custom_call.1} parent=0
    _
  %s6 = ssub.s32 1, %s4
  %s7 = scalar_select 0, %s6, %s4
  $region1: #{tpu_custom_call.1} parent=0
    #allocation2 [shape = 'u8[8192]{0}', space=vmem, size = 0x2000, scoped, tag = 'input window, operand 0, single buffered']
    #allocation3 [shape = 's32[2]{0}', space=sflag, size = 0x8, scoped, tag = 'scoped memory for tpu_custom_call.1']
    #allocation4 [shape = 's32[2]{0}', space=sflag, size = 0x8, scoped, tag = 'scoped memory for tpu_custom_call.1']
    #allocation5 [shape = 'u8[131072]{0}', space=vmem, size = 0x20000, scoped, tag = 'input window, operand 1, single buffered']
    #allocation6 [shape = 's32[1]{0}', space=sflag, size = 0x4, scoped, tag = 'scoped memory for tpu_custom_call.1']
    #allocation7 [shape = 'u8[8192]{0}', space=vmem, size = 0x2000, scoped, tag = 'output window, operand 0, single buffered']
    %8 = vsyncpa [#allocation3], 0
    %9 = vsyncpa [#allocation6], 0
    %10 = vsyncpa [#allocation4], 0
    loop: start=0, step=1, limit=4
    $region2: #{tpu_custom_call.1} parent=1 // loop_pre_header
      _
    $region3: #{tpu_custom_call.1} parent=1 // loop_header
      %s12 = sphi 0, %s16
      %p13 = scmp.ge.s32.totalorder %s12, 4
      %s19 = sphi 0, %s31
      %s20 = sphi 0, %s27
      %s21 = sphi 0, %s19
      %s22 = sphi 0, %s20
      %s23 = sphi 0, %s21
      %s24 = sphi 0, %s22
      %s34 = sphi 0, %s36
      %s37 = sphi 0, %s34
      %s38 = sphi 0, %s37
      %s54 = sphi 0, %s38
      %s58 = sphi 0, %s58
      %s60 = sphi 0, %s58
      %s61 = sphi 0, %s60
      %s75 = sphi 0, %s61
      %s79 = sphi 0, %s79
      %s81 = sphi 0, %s79
      %s82 = sphi 0, %s81
      %s96 = sphi 0, %s82
      %s102 = sphi 0, %s104
      %s105 = sphi 0, %s102
      %s106 = sphi 0, %s105
      %s122 = sphi 0, %s106
    $region4: #{tpu_custom_call.1} parent=1 // loop_header_branch
      %15 = sbr.rel (%p13) target = $region8
    $region5: #{tpu_custom_call.1} parent=1 // loop_body
      %s17 = ssub.s32 %s12, 1
      %s18 = ssub.s32 %s12, 2
      %s25 = sadd.s32 1, %s20
      %p26 = scmp.ge.s32.totalorder %s25, 2
      %s27 = scalar_select %p26, 0, %s25
      %s28 = sadd.s32 1, %s19
      %s29 = scalar_select %p26, %s28, %s19
      %p30 = scmp.ge.s32.totalorder %s29, 1
      %s31 = scalar_select %p30, 0, %s29
      %s32 = ssub.s32 %s19, %s31
      %p33 = scmp.eq.s32.totalorder %s32, 0
      %s35 = sadd.s32 %s34, 1
      %s36 = scalar_select %p33, %s34, %s35
      %p39 = pneg %p33
      %p40 = scmp.eq.s32.totalorder %s12, 1
      %p41 = por %p39, %p40
      %p42 = scmp.ne.s32.totalorder %s34, %s37
      %p43 = scmp.eq.s32.totalorder %s12, 0
      %p44 = por %p42, %p43
      %p45 = scmp.ne.s32.totalorder %s34, %s37
      %p46 = scmp.eq.s32.totalorder %s17, 1
      %p47 = por %p45, %p46
      %p48 = scmp.ne.s32.totalorder %s37, %s38
      %p49 = scmp.eq.s32.totalorder %s17, 0
      %p50 = por %p48, %p49
      %p51 = scmp.ne.s32.totalorder %s37, %s38
      %p52 = scmp.eq.s32.totalorder %s18, 1
      %p53 = por %p51, %p52
      %p55 = scmp.ne.s32.totalorder %s38, %s54
      %p56 = scmp.eq.s32.totalorder %s18, 0
      %p57 = por %p55, %p56
      %s59 = sadd.s32 %s58, 1
      %p62 = scmp.eq.s32.totalorder %s12, 1
      %p63 = scmp.ne.s32.totalorder %s58, %s60
      %p64 = scmp.eq.s32.totalorder %s12, 0
      %p65 = por %p63, %p64
      %p66 = scmp.ne.s32.totalorder %s58, %s60
      %p67 = scmp.eq.s32.totalorder %s17, 1
      %p68 = por %p66, %p67
      %p69 = scmp.ne.s32.totalorder %s60, %s61
      %p70 = scmp.eq.s32.totalorder %s17, 0
      %p71 = por %p69, %p70
      %p72 = scmp.ne.s32.totalorder %s60, %s61
      %p73 = scmp.eq.s32.totalorder %s18, 1
      %p74 = por %p72, %p73
      %p76 = scmp.ne.s32.totalorder %s61, %s75
      %p77 = scmp.eq.s32.totalorder %s18, 0
      %p78 = por %p76, %p77
      %s80 = sadd.s32 %s79, 1
      %p83 = scmp.eq.s32.totalorder %s12, 1
      %p84 = scmp.ne.s32.totalorder %s79, %s81
      %p85 = scmp.eq.s32.totalorder %s12, 0
      %p86 = por %p84, %p85
      %p87 = scmp.ne.s32.totalorder %s79, %s81
      %p88 = scmp.eq.s32.totalorder %s17, 1
      %p89 = por %p87, %p88
      %p90 = scmp.ne.s32.totalorder %s81, %s82
      %p91 = scmp.eq.s32.totalorder %s17, 0
      %p92 = por %p90, %p91
      %p93 = scmp.ne.s32.totalorder %s81, %s82
      %p94 = scmp.eq.s32.totalorder %s18, 1
      %p95 = por %p93, %p94
      %p97 = scmp.ne.s32.totalorder %s82, %s96
      %p98 = scmp.eq.s32.totalorder %s18, 0
      %p99 = por %p97, %p98
      %s100 = ssub.s32 %s19, %s31
      %p101 = scmp.eq.s32.totalorder %s100, 0
      %s103 = sadd.s32 %s102, 1
      %s104 = scalar_select %p101, %s102, %s103
      %p107 = pneg %p101
      %p108 = scmp.eq.s32.totalorder %s12, 1
      %p109 = por %p107, %p108
      %p110 = scmp.ne.s32.totalorder %s102, %s105
      %p111 = scmp.eq.s32.totalorder %s12, 0
      %p112 = por %p110, %p111
      %p113 = scmp.ne.s32.totalorder %s102, %s105
      %p114 = scmp.eq.s32.totalorder %s17, 1
      %p115 = por %p113, %p114
      %p116 = scmp.ne.s32.totalorder %s105, %s106
      %p117 = scmp.eq.s32.totalorder %s17, 0
      %p118 = por %p116, %p117
      %p119 = scmp.ne.s32.totalorder %s105, %s106
      %p120 = scmp.eq.s32.totalorder %s18, 1
      %p121 = por %p119, %p120
      %p123 = scmp.ne.s32.totalorder %s106, %s122
      %p124 = scmp.eq.s32.totalorder %s18, 0
      %p125 = por %p123, %p124
      %p126 = scmp.le.s32.totalorder 1, %s12
      %p127 = scmp.lt.s32.totalorder %s12, 3
      %p128 = pnand %p126, %p127
      %p129 = pneg %p128
      // Predicated region
      $region9: #{tpu_custom_call.1} parent=5 // pred_check
        _
      $region10: #{tpu_custom_call.1} parent=5 // pred_check_branch
        %131 = sbr.rel (%p128) target = $region12
      $region11: #{tpu_custom_call.1} parent=5 // pred_region
        %s132 = ssub.s32 %s12, 1
        // Predicated region
        $region13: #{tpu_custom_call.1} parent=11 // pred_check
          %p133 = pneg %p50
        $region14: #{tpu_custom_call.1} parent=11 // pred_check_branch
          %135 = sbr.rel (%p133) target = $region16
        $region15: #{tpu_custom_call.1} parent=11 // pred_region
          %s136 = smul.u32 2, %s21
          %s138 = ssub.s32 256, 256
          %139 = vsyncadd [#allocation3], %s138
          %s140 = smul.addr %s136, 128
          %s141 = scalar_lea.hbm %s0, %s140
          %s142 = sshll.u32 [#allocation2], 4
          %s143 = int_to_ptr.vmem [resolvable:$true] %s142
          %148 = dma.hbm_to_vmem [thread:$0]  %s141, 256, %s143, [#allocation3], 128, 128, 8
        $region16: #{tpu_custom_call.1} parent=11 // pred_fallthru
          _
        // Predicated region
        $region17: #{tpu_custom_call.1} parent=11 // pred_check
          %p149 = pneg %p71
        $region18: #{tpu_custom_call.1} parent=11 // pred_check_branch
          %151 = sbr.rel (%p149) target = $region20
        $region19: #{tpu_custom_call.1} parent=11 // pred_region
          %s153 = ssub.s32 4096, 4096
          %154 = vsyncadd [#allocation6], %s153
          %s155 = sshll.u32 [#allocation5], 4
          %s156 = int_to_ptr.vmem [resolvable:$true] %s155
          %161 = dma.hbm_to_vmem [thread:$0]  %s1, 4096, %s156, [#allocation6], 128, 128, 8
        $region20: #{tpu_custom_call.1} parent=11 // pred_fallthru
          _
        // Predicated region
        $region21: #{tpu_custom_call.1} parent=11 // pred_check
          %p162 = pneg %p92
        $region22: #{tpu_custom_call.1} parent=11 // pred_check_branch
          %164 = sbr.rel (%p162) target = $region24
        $region23: #{tpu_custom_call.1} parent=11 // pred_region
          _
        $region24: #{tpu_custom_call.1} parent=11 // pred_fallthru
          _
      $region12: #{tpu_custom_call.1} parent=5 // pred_fallthru
        _
      %p165 = scmp.lt.s32.totalorder %s12, 2
      // Predicated region
      $region25: #{tpu_custom_call.1} parent=5 // pred_check
        %p166 = pneg %p165
      $region26: #{tpu_custom_call.1} parent=5 // pred_check_branch
        %168 = sbr.rel (%p166) target = $region28
      $region27: #{tpu_custom_call.1} parent=5 // pred_region
        _
      $region28: #{tpu_custom_call.1} parent=5 // pred_fallthru
        _
      %p169 = scmp.le.s32.totalorder 1, %s12
      %p170 = scmp.lt.s32.totalorder %s12, 3
      %p171 = pnand %p169, %p170
      %p172 = pneg %p171
      // Predicated region
      $region29: #{tpu_custom_call.1} parent=5 // pred_check
        _
      $region30: #{tpu_custom_call.1} parent=5 // pred_check_branch
        %174 = sbr.rel (%p171) target = $region32
      $region31: #{tpu_custom_call.1} parent=5 // pred_region
        %s175 = ssub.s32 %s12, 1
        // Predicated region
        $region33: #{tpu_custom_call.1} parent=31 // pred_check
          %p176 = pneg %p50
        $region34: #{tpu_custom_call.1} parent=31 // pred_check_branch
          %178 = sbr.rel (%p176) target = $region36
        $region35: #{tpu_custom_call.1} parent=31 // pred_region
          %179 = dma.done [#allocation3], 256
        $region36: #{tpu_custom_call.1} parent=31 // pred_fallthru
          _
        // Predicated region
        $region37: #{tpu_custom_call.1} parent=31 // pred_check
          %p180 = pneg %p71
        $region38: #{tpu_custom_call.1} parent=31 // pred_check_branch
          %182 = sbr.rel (%p180) target = $region40
        $region39: #{tpu_custom_call.1} parent=31 // pred_region
          %183 = dma.done [#allocation6], 4096
        $region40: #{tpu_custom_call.1} parent=31 // pred_fallthru
          _
        %p184 = pneg %p50
        %p185 = pneg %p47
        %p186 = pneg %p71
        %p187 = pneg %p68
        %p188 = pneg %p92
        %p189 = pneg %p89
        %p190 = pneg %p118
        %p191 = pneg %p115
        %s192 = smul.u32 2, %s21
        %s193 = smul.u32 2, %s21
        %p195 = scmp.eq.s32.totalorder %s22, 0
        // Predicated region
        $region41: #{tpu_custom_call.1} parent=31 // pred_check
          %p196 = pneg %p195
        $region42: #{tpu_custom_call.1} parent=31 // pred_check_branch
          %198 = sbr.rel (%p196) target = $region44
        $region43: #{tpu_custom_call.1} parent=31 // pred_region
          %v199 = vld [vmem:[#allocation2] sm:$0xff]
          %v200 = vld [vmem:[#allocation2 + $0x8] sm:$0xff]
          %201 = vst [vmem:[#allocation7] sm:$0xff] %v199
          %202 = vst [vmem:[#allocation7 + $0x8] sm:$0xff] %v200
        $region44: #{tpu_custom_call.1} parent=31 // pred_fallthru
          _
        %v203 = vld [vmem:[#allocation7] sm:$0xff]
        %v204 = vld [vmem:[#allocation7 + $0x8] sm:$0xff]
        %s205 = smul.u32 %s22, 32
        %s206 = smul.addr %s205, 4
        %s207 = scalar_lea.vmem [#allocation5], %s206
        %v208 = vld [vmem:[%s207] sm:$0xff]
        %v209 = vld [vmem:[%s207 + $0x8] sm:$0xff]
        %v210 = vld [vmem:[%s207 + $0x10] sm:$0xff]
        %v211 = vld [vmem:[%s207 + $0x18] sm:$0xff]
        %v212 = vld [vmem:[%s207 + $0x20] sm:$0xff]
        %v213 = vld [vmem:[%s207 + $0x28] sm:$0xff]
        %v214 = vld [vmem:[%s207 + $0x30] sm:$0xff]
        %v215 = vld [vmem:[%s207 + $0x38] sm:$0xff]
        %v216 = vld [vmem:[%s207 + $0x40] sm:$0xff]
        %v217 = vld [vmem:[%s207 + $0x48] sm:$0xff]
        %v218 = vld [vmem:[%s207 + $0x50] sm:$0xff]
        %v219 = vld [vmem:[%s207 + $0x58] sm:$0xff]
        %v220 = vld [vmem:[%s207 + $0x60] sm:$0xff]
        %v221 = vld [vmem:[%s207 + $0x68] sm:$0xff]
        %v222 = vld [vmem:[%s207 + $0x70] sm:$0xff]
        %v223 = vld [vmem:[%s207 + $0x78] sm:$0xff]
        %s224 = smul.u32 %s22, 2
        %s225 = scalar_lea.vmem %s2, %s224
        %v226 = vld [vmem:[%s225] sm:$0x3]
        %v227 = vpack.c.bf16 %v204, %v203
        %v229 = vlaneseq
        %v230 = vshrl.u32 %v229, 7
        %v231 = vsub.s32 0, %v230
        %v232 = vrot.slane %v226, %v231
        %v233 = vlaneseq
        %v234 = vshrl.u32 %v233, 7
        %v235 = vsub.s32 1, %v234
        %v236 = vrot.slane %v226, %v235
        %v255 = vunpack.c.l.b16 %v208
        %v256 = vunpack.c.h.b16 %v208
        %v257 = vunpack.c.l.b16 %v209
        %v258 = vunpack.c.h.b16 %v209
        %v259 = vunpack.c.l.b16 %v210
        %v260 = vunpack.c.h.b16 %v210
        %v261 = vunpack.c.l.b16 %v211
        %v262 = vunpack.c.h.b16 %v211
        %v263 = vunpack.c.l.b16 %v212
        %v264 = vunpack.c.h.b16 %v212
        %v265 = vunpack.c.l.b16 %v213
        %v266 = vunpack.c.h.b16 %v213
        %v267 = vunpack.c.l.b16 %v214
        %v268 = vunpack.c.h.b16 %v214
        %v269 = vunpack.c.l.b16 %v215
        %v270 = vunpack.c.h.b16 %v215
        %v271 = vunpack.c.l.b16 %v216
        %v272 = vunpack.c.h.b16 %v216
        %v273 = vunpack.c.l.b16 %v217
        %v274 = vunpack.c.h.b16 %v217
        %v275 = vunpack.c.l.b16 %v218
        %v276 = vunpack.c.h.b16 %v218
        %v277 = vunpack.c.l.b16 %v219
        %v278 = vunpack.c.h.b16 %v219
        %v279 = vunpack.c.l.b16 %v220
        %v280 = vunpack.c.h.b16 %v220
        %v281 = vunpack.c.l.b16 %v221
        %v282 = vunpack.c.h.b16 %v221
        %v283 = vunpack.c.l.b16 %v222
        %v284 = vunpack.c.h.b16 %v222
        %v285 = vunpack.c.l.b16 %v223
        %v286 = vunpack.c.h.b16 %v223
        %v287 = vpack.c.b16 %v257, %v255
        %v288 = vpack.c.b16 %v258, %v256
        %v289 = vpack.c.b16 %v261, %v259
        %v290 = vpack.c.b16 %v262, %v260
        %v291 = vpack.c.b16 %v265, %v263
        %v292 = vpack.c.b16 %v266, %v264
        %v293 = vpack.c.b16 %v269, %v267
        %v294 = vpack.c.b16 %v270, %v268
        %v295 = vpack.c.b16 %v273, %v271
        %v296 = vpack.c.b16 %v274, %v272
        %v297 = vpack.c.b16 %v277, %v275
        %v298 = vpack.c.b16 %v278, %v276
        %v299 = vpack.c.b16 %v281, %v279
        %v300 = vpack.c.b16 %v282, %v280
        %v301 = vpack.c.b16 %v285, %v283
        %v302 = vpack.c.b16 %v286, %v284
        %319 = vmatprep.subr.bf16.mxu0 %v288
        %320 = vmatpush1.bf16.msra.mxu0 %v287
        %321 = vmatprep.subr.bf16.mxu0 %v290
        %322 = vmatpush1.bf16.msra.mxu0 %v289
        %323 = vmatprep.subr.bf16.mxu0 %v292
        %324 = vmatpush1.bf16.msra.mxu0 %v291
        %325 = vmatprep.subr.bf16.mxu0 %v294
        %326 = vmatpush1.bf16.msra.mxu0 %v293
        %327 = vmatprep.subr.bf16.mxu0 %v296
        %328 = vmatpush1.bf16.msra.mxu0 %v295
        %329 = vmatprep.subr.bf16.mxu0 %v298
        %330 = vmatpush1.bf16.msra.mxu0 %v297
        %331 = vmatprep.subr.bf16.mxu0 %v300
        %332 = vmatpush1.bf16.msra.mxu0 %v299
        %333 = vmatprep.subr.bf16.mxu0 %v302
        %334 = vmatpush1.bf16.msra.mxu0 %v301
        %335 = vmatprep.subr.bf16.mxu0 0
        %336 = vmatpush1.bf16.msra.mxu0 0
        %337 = vmatprep.subr.bf16.mxu0 0
        %338 = vmatpush1.bf16.msra.mxu0 0
        %339 = vmatprep.subr.bf16.mxu0 0
        %340 = vmatpush1.bf16.msra.mxu0 0
        %341 = vmatprep.subr.bf16.mxu0 0
        %342 = vmatpush1.bf16.msra.mxu0 0
        %343 = vmatprep.subr.bf16.mxu0 0
        %344 = vmatpush1.bf16.msra.mxu0 0
        %345 = vmatprep.subr.bf16.mxu0 0
        %346 = vmatpush1.bf16.msra.mxu0 0
        %347 = vmatprep.subr.bf16.mxu0 0
        %348 = vmatpush1.bf16.msra.mxu0 0
        %349 = vmatprep.subr.bf16.mxu0 0
        %350 = vmatpush1.bf16.msra.mxu0 0
        %351 = vmatprep.mubr.bf16.mxu0 0
        %352 = vmatmul.mubr.bf16.gmra.mrb[0].mxu0 %v227
        %v353 = vpop.f32.mrb[0].mxu0
        %v354 = vadd.f32 %v232, %v353
        %v355 = vpop.f32.mrb[0].mxu0
        %v356 = vadd.f32 %v236, %v355
        %v357 = vpop.f32.mrb[0].mxu0
        %v358 = vadd.f32 %v232, %v357
        %v359 = vpop.f32.mrb[0].mxu0
        %v360 = vadd.f32 %v236, %v359
        %361 = vdwg.mxu0
        %v362 = vmax.f32 %v354, 0.0
        %v363 = vmax.f32 %v358, 0.0
        %v364 = vsub.f32 0.0, %v356
        %v365 = vsub.f32 0.0, %v360
        %v366 = vmul.f32 %v364, 1.442695
        %v367 = vpow.pop %v366
        %v368 = vmul.f32 %v365, 1.442695
        %v369 = vpow.pop %v368
        %v370 = vadd.f32 %v367, 1.0
        %v371 = vadd.f32 %v369, 1.0
        %v372 = vrcp.pop %v370
        %v373 = vrcp.pop %v371
        %v374 = vsub.f32 %v203, %v362
        %v375 = vsub.f32 %v204, %v363
        %v376 = vmul.f32 %v372, %v374
        %v377 = vmul.f32 %v373, %v375
        %v378 = vadd.f32 %v362, %v376
        %v379 = vadd.f32 %v363, %v377
        %380 = vst [vmem:[#allocation7] sm:$0xff] %v378
        %381 = vst [vmem:[#allocation7 + $0x8] sm:$0xff] %v379
        // Predicated region
        $region45: #{tpu_custom_call.1} parent=31 // pred_check
          %p382 = pneg %p115
        $region46: #{tpu_custom_call.1} parent=31 // pred_check_branch
          %384 = sbr.rel (%p382) target = $region48
        $region47: #{tpu_custom_call.1} parent=31 // pred_region
          %s385 = smul.u32 2, %s21
          %s387 = ssub.s32 256, 256
          %388 = vsyncadd [#allocation4], %s387
          %s389 = smul.addr %s385, 128
          %s390 = scalar_lea.hbm %s3, %s389
          %s391 = sshll.u32 [#allocation7], 4
          %s392 = int_to_ptr.vmem [resolvable:$true] %s391
          %397 = dma.vmem_to_hbm [thread:$0]  %s392, 256, %s390, [#allocation4], 128, 128, 8
        $region48: #{tpu_custom_call.1} parent=31 // pred_fallthru
          _
        // Predicated region
        $region49: #{tpu_custom_call.1} parent=31 // pred_check
          %p398 = pneg %p115
        $region50: #{tpu_custom_call.1} parent=31 // pred_check_branch
          %400 = sbr.rel (%p398) target = $region52
        $region51: #{tpu_custom_call.1} parent=31 // pred_region
          %401 = dma.done [#allocation4], 256
        $region52: #{tpu_custom_call.1} parent=31 // pred_fallthru
          _
      $region32: #{tpu_custom_call.1} parent=5 // pred_fallthru
        _
      %p402 = scmp.le.s32.totalorder 2, %s12
      // Predicated region
      $region53: #{tpu_custom_call.1} parent=5 // pred_check
        %p403 = pneg %p402
      $region54: #{tpu_custom_call.1} parent=5 // pred_check_branch
        %405 = sbr.rel (%p403) target = $region56
      $region55: #{tpu_custom_call.1} parent=5 // pred_region
        %s406 = ssub.s32 %s12, 2
      $region56: #{tpu_custom_call.1} parent=5 // pred_fallthru
        _
    $region6: #{tpu_custom_call.1} parent=1 // loop_footer
      %s16 = sadd.s32 1, %s12
    $region7: #{tpu_custom_call.1} parent=1 // loop_footer_branch
      %11 = sbr.rel target = $region3
    $region8: #{tpu_custom_call.1} parent=1 // loop_exit
      _
    %407 = vsyncpa [#allocation3], 1
    %s408 = scalar_lea.sflag [#allocation3], 1
    %409 = vsyncpa %s408, 1
    %410 = vsyncpa [#allocation6], 1
    %411 = vsyncpa [#allocation4], 1
    %s412 = scalar_lea.sflag [#allocation4], 1
    %413 = vsyncpa %s412, 1

</llo_original>
